<compile_context>
chip_gen: v5e
topology: v5e:2x2
jax: 0.10.0
libtpu: 0.0.40
codegen_flags: <defaults>
</compile_context>

<pallas_src>
import jax
import jax.numpy as jnp
from jax.experimental import pallas as pl
from jax.experimental.pallas import tpu as pltpu


def _conv1x1_bn_relu6_kernel(x_ref, w_ref, b_ref, o_ref):
    # x_ref: (1, Cin, TM)   activation slab (spatial/batch on lanes)
    # w_ref: (TC, Cin)      weights with BN scale folded in (folded in f32)
    # b_ref: (TC, 1)        folded BN bias (f32)
    # o_ref: (1, TC, TM)    output slab (lane-dense store)
    acc = jnp.dot(w_ref[...], x_ref[0],
                  preferred_element_type=jnp.float32)        # MXU, f32 accum
    y = acc + b_ref[...]                                     # per-channel bias
    y = jnp.minimum(jnp.maximum(y, 0.0), 6.0)                # relu6
    o_ref[0] = y.astype(o_ref.dtype)


def _vmem_budget_bytes():
    """Per-core VMEM budget with compiler headroom (generation-aware)."""
    cap = 64 << 20                       # conservative default = v7x per-TC VMEM
    try:
        cap = int(pltpu.get_tpu_info().vmem_capacity_bytes)
    except Exception:
        pass
    return (cap * 3) // 4                # 48 MiB on v7x, 96 MiB on v5e/v6e


def conv2d_1x1_forward(x_nchw, weight, gamma, beta, running_mean, running_var,
                       *, stride, eps=1e-5, tm=1024, compute_dtype=jnp.bfloat16):
    """x_nchw: (N, Cin, H, W); weight: (Cout, Cin, 1, 1)."""
    n, cin, h, w = x_nchw.shape
    cout = weight.shape[0]
    out_dtype = x_nchw.dtype
    assert tm % 128 == 0, "tm must be a multiple of 128"

    # 1x1 conv with stride == spatial subsampling, then a per-pixel channel
    # matmul.  stride == 1 is a pure reshape (no HBM copy); the stride>1 slice
    # producer is allowed to fuse into the kernel input (allow_input_fusion).
    x_s = x_nchw if stride == 1 else x_nchw[:, :, ::stride, ::stride]
    ho, wo = x_s.shape[2], x_s.shape[3]
    m = ho * wo

    # Fold eval-mode BatchNorm in f32: y = conv*scale + (beta - mean*scale).
    scale = gamma / jnp.sqrt(running_var + eps)                 # (Cout,)
    bias = beta - running_mean * scale                          # (Cout,)
    w_mat = weight.reshape(cout, cin).astype(jnp.float32) * scale[:, None]
    bias2d = bias.reshape(cout, 1).astype(jnp.float32)

    x_mat = x_s.reshape(n, cin, m)                 # pure reshape, no transpose
    if compute_dtype is not None and x_mat.dtype != compute_dtype:
        x_mat = x_mat.astype(compute_dtype)        # bf16 halves HBM read traffic
    w_mat = w_mat.astype(x_mat.dtype)

    # Lane-density fix for small feature maps: fold batch into the lane axis
    # (one cheap transpose on a small tensor) so stores stay unmasked.
    merge_batch = (m % 128 != 0) and n > 1 and (
        n * cin * m * jnp.dtype(x_mat.dtype).itemsize <= (8 << 20))
    if merge_batch:
        x_mat = jnp.transpose(x_mat, (1, 0, 2)).reshape(1, cin, n * m)
    n_g = x_mat.shape[0]
    lanes = x_mat.shape[2]                         # spatial(+batch) lane extent

    xb = jnp.dtype(x_mat.dtype).itemsize
    wb = jnp.dtype(w_mat.dtype).itemsize
    ob = jnp.dtype(out_dtype).itemsize

    budget = _vmem_budget_bytes()

    # Keep the whole Cout in one tile whenever the (tiny) 1x1 weight fits
    # comfortably, so the activation slab is never re-streamed across Cout.
    if 2 * cout * cin * wb <= budget // 4:
        tc_eff = cout
    else:
        tc_eff = min(cout, 256)

    tm_eff = lanes if lanes < tm else tm

    def est_vmem(tm_e, tc_e):
        return (2 * cin * tm_e * xb        # double-buffered X slab
                + 2 * tc_e * tm_e * ob     # double-buffered O slab
                + 2 * tc_e * cin * wb      # double-buffered W
                + 2 * tc_e * 4)            # bias

    # Large-Cin fallback: shrink the lane tile (then the Cout tile) until the
    # pipeline fits the per-generation VMEM budget with headroom.
    while est_vmem(tm_eff, tc_eff) > budget and tm_eff > 128:
        tm_eff = max(128, ((tm_eff // 2) // 128) * 128)
    while est_vmem(tm_eff, tc_eff) > budget and tc_eff > 128:
        tc_eff = max(128, ((tc_eff // 2) // 8) * 8)

    m_tiles = -(-lanes // tm_eff)
    c_tiles = -(-cout // tc_eff)

    # v7x has two TensorCores: make sure there are >= 2 parallel grid tiles.
    if n_g * m_tiles * c_tiles == 1 and tm_eff >= 256:
        tm_eff = ((tm_eff // 2 + 127) // 128) * 128
        m_tiles = -(-lanes // tm_eff)

    # Grid order: Cout tiles INNERMOST so the X block (depends on (b, i) only)
    # is DMAed once and reused; only the small weight block re-DMAs inside.
    grid = (n_g, m_tiles, c_tiles)

    vmem_limit = int(min(max(2 * est_vmem(tm_eff, tc_eff), 32 << 20), budget))

    # Honest traffic estimate for XLA's scheduler (X read once; W re-read only
    # when Cout has to be tiled).
    w_bytes = (cout * cin * wb if c_tiles == 1
               else n_g * m_tiles * c_tiles * tc_eff * cin * wb)
    cost = pl.CostEstimate(
        flops=2 * n * m * cin * cout,
        transcendentals=0,
        bytes_accessed=(n_g * cin * lanes * xb + w_bytes + cout * 4
                        + n_g * cout * lanes * ob),
    )

    out = pl.pallas_call(
        _conv1x1_bn_relu6_kernel,
        out_shape=jax.ShapeDtypeStruct((n_g, cout, lanes), out_dtype),
        grid_spec=pltpu.PrefetchScalarGridSpec(
            num_scalar_prefetch=0,
            grid=grid,
            in_specs=[
                pl.BlockSpec((1, cin, tm_eff), lambda b, i, c: (b, 0, i)),
                pl.BlockSpec((tc_eff, cin), lambda b, i, c: (c, 0)),
                pl.BlockSpec((tc_eff, 1), lambda b, i, c: (c, 0)),
            ],
            out_specs=pl.BlockSpec((1, tc_eff, tm_eff),
                                   lambda b, i, c: (b, c, i)),
        ),
        compiler_params=pltpu.CompilerParams(
            dimension_semantics=("parallel", "parallel", "parallel"),
            vmem_limit_bytes=vmem_limit,
            allow_input_fusion=[True, False, False]),
        cost_estimate=cost,
    )(x_mat, w_mat, bias2d)

    if merge_batch:
        out = jnp.transpose(out.reshape(cout, n, ho, wo), (1, 0, 2, 3))
    else:
        out = out.reshape(n, cout, ho, wo)
    return out


def reference_forward(x_nchw, weight, gamma, beta, running_mean, running_var,
                      *, stride, eps=1e-5):
    x_s = x_nchw[:, :, ::stride, ::stride]
    y = jnp.einsum('nchw,oc->nohw', x_s, weight.reshape(weight.shape[0], -1),
                   precision=jax.lax.Precision.HIGHEST)
    scale = gamma / jnp.sqrt(running_var + eps)
    bias = beta - running_mean * scale
    y = y * scale[None, :, None, None] + bias[None, :, None, None]
    return jnp.clip(y, 0.0, 6.0)


if __name__ == "__main__":
    key = jax.random.PRNGKey(0)
    k_x, k_w = jax.random.split(key)

    batch, inp, oup, spatial, stride = 2, 4, 8, 16, 2

    x = jax.random.normal(k_x, (batch, inp, spatial, spatial), dtype=jnp.float32)
    # Conv2d weight (Cout, Cin, 1, 1), bias=False.
    weight = jax.random.normal(k_w, (oup, inp, 1, 1), dtype=jnp.float32) * 0.1
    # BatchNorm2d default init: gamma=1, beta=0, running_mean=0, running_var=1.
    gamma = jnp.ones((oup,), jnp.float32)
    beta = jnp.zeros((oup,), jnp.float32)
    running_mean = jnp.zeros((oup,), jnp.float32)
    running_var = jnp.ones((oup,), jnp.float32)

    # 1) Default (bf16 compute, stride=2 -> batch-merged lane path).
    out_bf16 = jax.block_until_ready(
        conv2d_1x1_forward(x, weight, gamma, beta, running_mean, running_var,
                           stride=stride))
    ref_s2 = reference_forward(x, weight, gamma, beta, running_mean,
                               running_var, stride=stride)
    assert out_bf16.shape == (batch, oup, spatial // stride, spatial // stride)
    assert jnp.allclose(out_bf16, ref_s2, atol=3e-2, rtol=3e-2)

    # 2) f32 compute, stride=1 (pure-reshape, per-image lane path).
    out_f32 = jax.block_until_ready(
        conv2d_1x1_forward(x, weight, gamma, beta, running_mean, running_var,
                           stride=1, compute_dtype=None))
    ref_s1 = reference_forward(x, weight, gamma, beta, running_mean,
                               running_var, stride=1)
    assert out_f32.shape == (batch, oup, spatial, spatial)
    # Tolerance allows for MXU accumulation-order differences vs XLA einsum.
    assert jnp.allclose(out_f32, ref_s1, atol=5e-3, rtol=5e-3)

    print("KERNEL_OK")
</pallas_src>

<mosaic_0001>
module attributes {stable_mosaic.version = 11 : i64} {
  func.func @_conv1x1_bn_relu6_kernel(%arg0: i32, %arg1: i32, %arg2: i32, %arg3: memref<1x4x128xbf16, #tpu.memory_space<vmem>>, %arg4: memref<8x4xbf16, #tpu.memory_space<vmem>>, %arg5: memref<8x1xf32, #tpu.memory_space<vmem>>, %arg6: memref<1x8x128xf32, #tpu.memory_space<vmem>>) attributes {dimension_semantics = [#tpu.dimension_semantics<parallel>, #tpu.dimension_semantics<parallel>, #tpu.dimension_semantics<parallel>], iteration_bounds = array<i64: 1, 1, 1>, scalar_prefetch = 0 : i64, scratch_operands = 0 : i64, tpu.core_type = #tpu.core_type<tc>, window_params = [{transform_indices = @transform_0, window_bounds = array<i64: 1, 4, 128>}, {transform_indices = @transform_1, window_bounds = array<i64: 8, 4>}, {transform_indices = @transform_2, window_bounds = array<i64: 8, 1>}, {transform_indices = @transform_3, window_bounds = array<i64: 1, 8, 128>}]} {
    %c0 = arith.constant 0 : index
    %c0_0 = arith.constant 0 : index
    %0 = vector.load %arg4[%c0, %c0_0] : memref<8x4xbf16, #tpu.memory_space<vmem>>, vector<8x4xbf16>
    %c0_1 = arith.constant 0 : index
    %c0_2 = arith.constant 0 : index
    %c0_3 = arith.constant 0 : index
    %1 = vector.load %arg3[%c0_1, %c0_2, %c0_3] : memref<1x4x128xbf16, #tpu.memory_space<vmem>>, vector<1x4x128xbf16>
    %2 = vector.shape_cast %1 : vector<1x4x128xbf16> to vector<4x128xbf16>
    %cst = arith.constant dense<0.000000e+00> : vector<8x128xf32>
    %3 = tpu.matmul %0, %2, %cst {dimension_numbers = #tpu.dot_dimension_numbers<[1], [0], [0], [1], [0, 0, 1, 1], [], []>} : vector<8x4xbf16>, vector<4x128xbf16>, vector<8x128xf32> -> vector<8x128xf32>
    %c0_4 = arith.constant 0 : index
    %c0_5 = arith.constant 0 : index
    %4 = vector.load %arg5[%c0_4, %c0_5] : memref<8x1xf32, #tpu.memory_space<vmem>>, vector<8x1xf32>
    %5 = vector.broadcast %4 : vector<8x1xf32> to vector<8x128xf32>
    %6 = arith.addf %3, %5 : vector<8x128xf32>
    %cst_6 = arith.constant 0.000000e+00 : f32
    %7 = vector.broadcast %cst_6 : f32 to vector<8x128xf32>
    %8 = arith.maximumf %6, %7 : vector<8x128xf32>
    %cst_7 = arith.constant 6.000000e+00 : f32
    %9 = vector.broadcast %cst_7 : f32 to vector<8x128xf32>
    %10 = arith.minimumf %8, %9 : vector<8x128xf32>
    %c0_8 = arith.constant 0 : index
    %c0_9 = arith.constant 0 : index
    %c0_10 = arith.constant 0 : index
    %11 = vector.load %arg6[%c0_8, %c0_9, %c0_10] : memref<1x8x128xf32, #tpu.memory_space<vmem>>, vector<1x8x128xf32>
    %12 = vector.shape_cast %11 : vector<1x8x128xf32> to vector<8x128xf32>
    %13 = vector.shape_cast %10 : vector<8x128xf32> to vector<1x8x128xf32>
    tpu.vector_store %arg6[%c0_8, %c0_9, %c0_10], %13 {strides = array<i32>} : memref<1x8x128xf32, #tpu.memory_space<vmem>>, vector<1x8x128xf32>,
    return
  }
  func.func @transform_0(%arg0: i32, %arg1: i32, %arg2: i32) -> (i32, i32, i32) {
    %c0_i32 = arith.constant 0 : i32
    %c0_i32_0 = arith.constant 0 : i32
    return %arg0, %c0_i32, %arg1 : i32, i32, i32
  }
  func.func @transform_1(%arg0: i32, %arg1: i32, %arg2: i32) -> (i32, i32) {
    %c0_i32 = arith.constant 0 : i32
    %c0_i32_0 = arith.constant 0 : i32
    return %arg2, %c0_i32 : i32, i32
  }
  func.func @transform_2(%arg0: i32, %arg1: i32, %arg2: i32) -> (i32, i32) {
    %c0_i32 = arith.constant 0 : i32
    %c0_i32_0 = arith.constant 0 : i32
    return %arg2, %c0_i32 : i32, i32
  }
  func.func @transform_3(%arg0: i32, %arg1: i32, %arg2: i32) -> (i32, i32, i32) {
    %c0_i32 = arith.constant 0 : i32
    return %arg0, %arg2, %arg1 : i32, i32, i32
  }
}

</mosaic_0001>

<llo_original>
// kernel: tpu_custom_call.1
$region0: #{tpu_custom_call.1}
  #allocation0 [shape = 'u32[]', space=smem, size = 0x4, offset = 0x4, fixed_abs, tag = 'smem constant byte address 0x4 - core index']
  #allocation1 [shape = 'u32[72,128]{1,0:T(1,128)}', space=vmem, size = 0x9000, scoped, tag = 'internal scratch']
  %s0 = inlined_call_operand.vmem [shape: bf16[1,4,128], index: 0, kind: input, shape index: {}]
  %s1 = inlined_call_operand.vmem [shape: bf16[8,4], index: 1, kind: input, shape index: {}]
  %s2 = inlined_call_operand.vmem [shape: f32[8,1], index: 2, kind: input, shape index: {}]
  %s3 = inlined_call_operand.hbm [shape: f32[1,8,128], index: 3, kind: output, shape index: {}]
  %s4 = sld [smem:[#allocation0]]
  $region22: #{tpu_custom_call.1} parent=0
    _
  %s6 = ssub.s32 1, %s4
  %s7 = scalar_select 0, %s6, %s4
  $region1: #{tpu_custom_call.1} parent=0
    #allocation2 [shape = 'u8[4096]{0}', space=vmem, size = 0x1000, scoped, tag = 'output window, operand 0, single buffered']
    #allocation3 [shape = 's32[1]{0}', space=sflag, size = 0x4, scoped, tag = 'scoped memory for tpu_custom_call.1']
    %8 = vsyncpa [#allocation3], 0
    // Predicated region
    $region2: #{tpu_custom_call.1} parent=1 // pred_check
      _
    $region3: #{tpu_custom_call.1} parent=1 // pred_check_branch
      %10 = sbr.rel (0) target = $region5
    $region4: #{tpu_custom_call.1} parent=1 // pred_region
      _
    $region5: #{tpu_custom_call.1} parent=1 // pred_fallthru
      _
    // Predicated region
    $region6: #{tpu_custom_call.1} parent=1 // pred_check
      _
    $region7: #{tpu_custom_call.1} parent=1 // pred_check_branch
      %12 = sbr.rel (0) target = $region9
    $region8: #{tpu_custom_call.1} parent=1 // pred_region
      _
    $region9: #{tpu_custom_call.1} parent=1 // pred_fallthru
      _
    // Predicated region
    $region10: #{tpu_custom_call.1} parent=1 // pred_check
      _
    $region11: #{tpu_custom_call.1} parent=1 // pred_check_branch
      %14 = sbr.rel (0) target = $region13
    $region12: #{tpu_custom_call.1} parent=1 // pred_region
      _
    $region13: #{tpu_custom_call.1} parent=1 // pred_fallthru
      _
    %v16 = vld [vmem:[%s1] sm:$0xf]
    %v17 = vld [vmem:[%s0] sm:$0x3]
    %v18 = vld [vmem:[%s2] sm:$0xff]
    %20 = vset.pattern.permute.xlu0 0
    %21 = vperm.xlu0 %20, %v18
    %v22 = vpop.permute.xlu0 %21
    %vm24 = vcmask 31744
    %v26 = vsel %vm24, %v16, 0
    %vm28 = vcmask 1041408
    %v30 = vsel %vm28, %v17, 0
    %32 = vmatpush.bf16.msra.mxu0 0
    %33 = vmatpush.bf16.msra.mxu0 0
    %34 = vmatpush.bf16.msra.mxu0 0
    %35 = vmatpush.bf16.msra.mxu0 0
    %36 = vmatpush.bf16.msra.mxu0 0
    %37 = vmatpush.bf16.msra.mxu0 0
    %38 = vmatpush.bf16.msra.mxu0 0
    %39 = vmatpush.bf16.msra.mxu0 %v30
    %40 = vmatmul.bf16.gmra.mxu0 %v26
    %v41 = vpop.f32.mrf.mxu0
    %v42 = vadd.f32 %v22, %v41
    %v43 = vpop.f32.mrf.mxu0
    %44 = vdwg.mxu0
    %v45 = vmax.f32 %v42, 0.0
    %v46 = vmin.f32 %v45, 6.0
    %47 = vst [vmem:[#allocation2] sm:$0xff] %v46
    // Predicated region
    $region14: #{tpu_custom_call.1} parent=1 // pred_check
      _
    $region15: #{tpu_custom_call.1} parent=1 // pred_check_branch
      %49 = sbr.rel (0) target = $region17
    $region16: #{tpu_custom_call.1} parent=1 // pred_region
      %51 = vsyncadd [#allocation3], 0
      %s53 = sshll.u32 [#allocation2], 4
      %s54 = int_to_ptr.vmem [resolvable:$true] %s53
      %s55 = sshll.u32 %s3, 4
      %s56 = int_to_ptr.hbm [resolvable:$true] %s55
      %58 = dma.vmem_to_hbm [thread:$0]  %s54, 128, %s56, [#allocation3]
    $region17: #{tpu_custom_call.1} parent=1 // pred_fallthru
      _
    // Predicated region
    $region18: #{tpu_custom_call.1} parent=1 // pred_check
      _
    $region19: #{tpu_custom_call.1} parent=1 // pred_check_branch
      %60 = sbr.rel (0) target = $region21
    $region20: #{tpu_custom_call.1} parent=1 // pred_region
      %62 = dma.done [#allocation3], 128
    $region21: #{tpu_custom_call.1} parent=1 // pred_fallthru
      _
    %63 = vsyncpa [#allocation3], 1

</llo_original>
